<compile_context>
chip_gen: v7x
topology: tpu7x:2x2x1
jax: 0.10.0
libtpu: 0.0.40
codegen_flags: <defaults>
</compile_context>

<pallas_src>
import functools

import jax
import jax.numpy as jnp
from jax.experimental import pallas as pl
from jax.experimental.pallas import tpu as pltpu

BN_EPS = 1e-5      # nn.BatchNorm1d default eps
NORM_EPS = 1e-12   # F.normalize default eps


def _round_up(x, m):
    return (x + m - 1) // m * m


# ----------------------------------------------------------------------------
# Fused kernel: one batch-row tile per grid step.
#   h   = relu((x @ W1) * scale + bias)     (BN + Linear bias folded)
#   z   = h @ W2                            (no bias)
#   out = z / max(||z||_2, eps)             (row-wise, dim=1)
# ----------------------------------------------------------------------------
def _global_projector_kernel(x_ref, w1_ref, s_ref, b_ref, w2_ref, o_ref):
    # First Linear on the MXU, f32 accumulation.
    h = jnp.dot(x_ref[...], w1_ref[...], preferred_element_type=jnp.float32)
    # Folded BN affine + ReLU (f32 epilogue; VPU).
    h = jnp.maximum(h * s_ref[...] + b_ref[...], 0.0)
    # Second Linear (bias=False); cast back to the weight dtype for the MXU.
    z = jnp.dot(h.astype(w2_ref.dtype), w2_ref[...],
                preferred_element_type=jnp.float32)
    # Row-wise L2 normalize (matches torch.nn.functional.normalize(dim=1)).
    norm = jnp.sqrt(jnp.sum(z * z, axis=-1, keepdims=True))
    inv = pl.reciprocal(jnp.maximum(norm, NORM_EPS))
    o_ref[...] = (z * inv).astype(o_ref.dtype)


def fold_bn(linear_bias, bn):
    """Fold Linear bias + inference-mode BN into per-feature scale/bias."""
    s = bn["gamma"] / jnp.sqrt(bn["var"] + BN_EPS)
    b = bn["beta"] - s * bn["mean"] + s * linear_bias
    return (s.reshape(1, -1).astype(jnp.float32),
            b.reshape(1, -1).astype(jnp.float32))


@functools.partial(jax.jit, static_argnames=("tm", "use_bf16"))
def global_projector_forward(x, w1, b1, bn, w2, *, tm=1024, use_bf16=False):
    m, din = x.shape
    dh = w1.shape[1]
    dout = w2.shape[1]

    scale, bias = fold_bn(b1, bn)

    if use_bf16:  # v6e/v7x fast path; accumulation + epilogue stay f32.
        x = x.astype(jnp.bfloat16)
        w1 = w1.astype(jnp.bfloat16)
        w2 = w2.astype(jnp.bfloat16)

    # Row tiling: never collapse to one giant tile; pad the batch instead
    # (padded rows are sliced off at the end, so they cannot affect results).
    tm_eff = min(tm, _round_up(m, 8))          # multiple of 8 (sublane) always
    m_pad = _round_up(m, tm_eff)
    if m_pad != m:
        x = jnp.pad(x, ((0, m_pad - m), (0, 0)))
    grid = (m_pad // tm_eff,)

    nbytes = jnp.dtype(x.dtype).itemsize
    cost = pl.CostEstimate(
        flops=2 * m_pad * din * dh + 2 * m_pad * dh * dout
              + 5 * m_pad * (dh + dout),
        transcendentals=2 * m_pad,
        bytes_accessed=(m_pad * din + din * dh + dh * dout) * nbytes
                       + 2 * dh * 4 + m_pad * dout * 4,
    )

    out = pl.pallas_call(
        _global_projector_kernel,
        out_shape=jax.ShapeDtypeStruct((m_pad, dout), jnp.float32),
        grid_spec=pltpu.PrefetchScalarGridSpec(
            num_scalar_prefetch=0,
            grid=grid,
            in_specs=[
                pl.BlockSpec((tm_eff, din), lambda i: (i, 0)),  # x row tile
                pl.BlockSpec((din, dh), lambda i: (0, 0)),      # W1 (resident)
                pl.BlockSpec((1, dh), lambda i: (0, 0)),        # folded scale
                pl.BlockSpec((1, dh), lambda i: (0, 0)),        # folded bias
                pl.BlockSpec((dh, dout), lambda i: (0, 0)),     # W2 (resident)
            ],
            out_specs=pl.BlockSpec((tm_eff, dout), lambda i: (i, 0)),
        ),
        compiler_params=pltpu.CompilerParams(
            dimension_semantics=("parallel",)),   # megacore shards row tiles
        cost_estimate=cost,
    )(x, w1, scale, bias, w2)
    return out[:m]


# ----------------------------------------------------------------------------
# Deterministic synthetic parameters + pure-JAX reference.
# ----------------------------------------------------------------------------
def init_params(key, din, dh, dout):
    k1, k2, k3, k4, k5, k6, k7 = jax.random.split(key, 7)
    w1 = jax.random.normal(k1, (din, dh), jnp.float32) / jnp.sqrt(din)
    b1 = 0.1 * jax.random.normal(k2, (dh,), jnp.float32)
    w2 = jax.random.normal(k3, (dh, dout), jnp.float32) / jnp.sqrt(dh)
    bn = dict(
        gamma=1.0 + 0.1 * jax.random.normal(k4, (dh,), jnp.float32),
        beta=0.1 * jax.random.normal(k5, (dh,), jnp.float32),
        mean=0.1 * jax.random.normal(k6, (dh,), jnp.float32),
        var=0.5 + jnp.abs(jax.random.normal(k7, (dh,), jnp.float32)),
    )
    return w1, b1, bn, w2


def ref_forward(x, w1, b1, bn, w2):
    y = x @ w1 + b1
    y = bn["gamma"] * (y - bn["mean"]) / jnp.sqrt(bn["var"] + BN_EPS) + bn["beta"]
    h = jnp.maximum(y, 0.0)
    z = h @ w2
    n = jnp.maximum(jnp.sqrt(jnp.sum(z * z, axis=1, keepdims=True)), NORM_EPS)
    return z / n


if __name__ == "__main__":
    B, D_IN, D_HID, D_OUT = 8, 16, 32, 8

    key = jax.random.PRNGKey(0)
    kx, kp, kx2 = jax.random.split(key, 3)
    x = jax.random.normal(kx, (B, D_IN), jnp.float32)
    w1, b1, bn, w2 = init_params(kp, D_IN, D_HID, D_OUT)

    # f32 path, single tile.
    out = jax.block_until_ready(global_projector_forward(x, w1, b1, bn, w2))
    assert out.shape == (B, D_OUT), out.shape
    ref = jax.block_until_ready(ref_forward(x, w1, b1, bn, w2))
    err = float(jnp.max(jnp.abs(out - ref)))
    assert err < 1e-4, f"f32 mismatch: max abs err {err}"

    # Multi-tile + row-padding path (grid of 2 tiles, 12 pad rows sliced off).
    B2 = 20
    x2 = jax.random.normal(kx2, (B2, D_IN), jnp.float32)
    out2 = jax.block_until_ready(
        global_projector_forward(x2, w1, b1, bn, w2, tm=16))
    ref2 = jax.block_until_ready(ref_forward(x2, w1, b1, bn, w2))
    err2 = float(jnp.max(jnp.abs(out2 - ref2)))
    assert out2.shape == (B2, D_OUT), out2.shape
    assert err2 < 1e-4, f"tiled-path mismatch: max abs err {err2}"

    # bf16 activations/weights (v6e/v7x), f32 accumulation + epilogue.
    out3 = jax.block_until_ready(
        global_projector_forward(x, w1, b1, bn, w2, use_bf16=True))
    err3 = float(jnp.max(jnp.abs(out3 - ref)))
    assert err3 < 0.1, f"bf16 mismatch: max abs err {err3}"

    print("KERNEL_OK")
</pallas_src>

<mosaic_0001>
module attributes {stable_mosaic.version = 11 : i64} {
  func.func @_global_projector_kernel(%arg0: i32, %arg1: memref<8x16xf32, #tpu.memory_space<vmem>>, %arg2: memref<16x32xf32, #tpu.memory_space<vmem>>, %arg3: memref<1x32xf32, #tpu.memory_space<vmem>>, %arg4: memref<1x32xf32, #tpu.memory_space<vmem>>, %arg5: memref<32x8xf32, #tpu.memory_space<vmem>>, %arg6: memref<8x8xf32, #tpu.memory_space<vmem>>) attributes {dimension_semantics = [#tpu.dimension_semantics<parallel>], iteration_bounds = array<i64: 1>, scalar_prefetch = 0 : i64, scratch_operands = 0 : i64, tpu.core_type = #tpu.core_type<tc>, window_params = [{transform_indices = @transform_0, window_bounds = array<i64: 8, 16>}, {pipeline_mode = #tpu.pipeline_mode<synchronous>, transform_indices = @transform_1, window_bounds = array<i64: 16, 32>}, {pipeline_mode = #tpu.pipeline_mode<synchronous>, transform_indices = @transform_2, window_bounds = array<i64: 1, 32>}, {pipeline_mode = #tpu.pipeline_mode<synchronous>, transform_indices = @transform_3, window_bounds = array<i64: 1, 32>}, {pipeline_mode = #tpu.pipeline_mode<synchronous>, transform_indices = @transform_4, window_bounds = array<i64: 32, 8>}, {transform_indices = @transform_5, window_bounds = array<i64: 8, 8>}]} {
    %c0 = arith.constant 0 : index
    %c0_0 = arith.constant 0 : index
    %0 = vector.load %arg1[%c0, %c0_0] : memref<8x16xf32, #tpu.memory_space<vmem>>, vector<8x16xf32>
    %c0_1 = arith.constant 0 : index
    %c0_2 = arith.constant 0 : index
    %1 = vector.load %arg2[%c0_1, %c0_2] : memref<16x32xf32, #tpu.memory_space<vmem>>, vector<16x32xf32>
    %cst = arith.constant dense<0.000000e+00> : vector<8x32xf32>
    %2 = tpu.matmul %0, %1, %cst {dimension_numbers = #tpu.dot_dimension_numbers<[1], [0], [0], [1], [0, 0, 1, 1], [], []>} : vector<8x16xf32>, vector<16x32xf32>, vector<8x32xf32> -> vector<8x32xf32>
    %c0_3 = arith.constant 0 : index
    %c0_4 = arith.constant 0 : index
    %3 = vector.load %arg3[%c0_3, %c0_4] : memref<1x32xf32, #tpu.memory_space<vmem>>, vector<1x32xf32>
    %4 = vector.broadcast %3 : vector<1x32xf32> to vector<8x32xf32>
    %5 = arith.mulf %2, %4 : vector<8x32xf32>
    %c0_5 = arith.constant 0 : index
    %c0_6 = arith.constant 0 : index
    %6 = vector.load %arg4[%c0_5, %c0_6] : memref<1x32xf32, #tpu.memory_space<vmem>>, vector<1x32xf32>
    %7 = vector.broadcast %6 : vector<1x32xf32> to vector<8x32xf32>
    %8 = arith.addf %5, %7 : vector<8x32xf32>
    %cst_7 = arith.constant 0.000000e+00 : f32
    %9 = vector.broadcast %cst_7 : f32 to vector<8x32xf32>
    %10 = arith.maximumf %8, %9 : vector<8x32xf32>
    %c0_8 = arith.constant 0 : index
    %c0_9 = arith.constant 0 : index
    %11 = vector.load %arg5[%c0_8, %c0_9] : memref<32x8xf32, #tpu.memory_space<vmem>>, vector<32x8xf32>
    %cst_10 = arith.constant dense<0.000000e+00> : vector<8x8xf32>
    %12 = tpu.matmul %10, %11, %cst_10 {dimension_numbers = #tpu.dot_dimension_numbers<[1], [0], [0], [1], [0, 0, 1, 1], [], []>} : vector<8x32xf32>, vector<32x8xf32>, vector<8x8xf32> -> vector<8x8xf32>
    %13 = arith.mulf %12, %12 : vector<8x8xf32>
    %cst_11 = arith.constant dense<0.000000e+00> : vector<8xf32>
    %14 = vector.multi_reduction <add>, %13, %cst_11 [1] : vector<8x8xf32> to vector<8xf32>
    %15 = vector.shape_cast %14 : vector<8xf32> to vector<8x1xf32>
    %16 = math.sqrt %15 : vector<8x1xf32>
    %cst_12 = arith.constant 9.99999996E-13 : f32
    %17 = vector.broadcast %cst_12 : f32 to vector<8x1xf32>
    %18 = arith.maximumf %16, %17 : vector<8x1xf32>
    %19 = tpu.reciprocal %18 : vector<8x1xf32> -> vector<8x1xf32>
    %20 = vector.broadcast %19 : vector<8x1xf32> to vector<8x8xf32>
    %21 = arith.mulf %12, %20 : vector<8x8xf32>
    %c0_13 = arith.constant 0 : index
    %c0_14 = arith.constant 0 : index
    %22 = vector.load %arg6[%c0_13, %c0_14] : memref<8x8xf32, #tpu.memory_space<vmem>>, vector<8x8xf32>
    tpu.vector_store %arg6[%c0_13, %c0_14], %21 {strides = array<i32>} : memref<8x8xf32, #tpu.memory_space<vmem>>, vector<8x8xf32>,
    return
  }
  func.func @transform_0(%arg0: i32) -> (i32, i32) {
    %c0_i32 = arith.constant 0 : i32
    %c0_i32_0 = arith.constant 0 : i32
    return %arg0, %c0_i32 : i32, i32
  }
  func.func @transform_1(%arg0: i32) -> (i32, i32) {
    %c0_i32 = arith.constant 0 : i32
    %c0_i32_0 = arith.constant 0 : i32
    %c0_i32_1 = arith.constant 0 : i32
    return %c0_i32, %c0_i32_0 : i32, i32
  }
  func.func @transform_2(%arg0: i32) -> (i32, i32) {
    %c0_i32 = arith.constant 0 : i32
    %c0_i32_0 = arith.constant 0 : i32
    %c0_i32_1 = arith.constant 0 : i32
    return %c0_i32, %c0_i32_0 : i32, i32
  }
  func.func @transform_3(%arg0: i32) -> (i32, i32) {
    %c0_i32 = arith.constant 0 : i32
    %c0_i32_0 = arith.constant 0 : i32
    %c0_i32_1 = arith.constant 0 : i32
    return %c0_i32, %c0_i32_0 : i32, i32
  }
  func.func @transform_4(%arg0: i32) -> (i32, i32) {
    %c0_i32 = arith.constant 0 : i32
    %c0_i32_0 = arith.constant 0 : i32
    %c0_i32_1 = arith.constant 0 : i32
    return %c0_i32, %c0_i32_0 : i32, i32
  }
  func.func @transform_5(%arg0: i32) -> (i32, i32) {
    %c0_i32 = arith.constant 0 : i32
    %c0_i32_0 = arith.constant 0 : i32
    return %arg0, %c0_i32 : i32, i32
  }
}

</mosaic_0001>

<llo_original>
// kernel: global_projector_forward.1
$region0: #{global_projector_forward.1}
  #allocation0 [shape = 'u32[]', space=smem, size = 0x4, offset = 0x4, fixed_abs, tag = 'smem constant byte address 0x4 - core index']
  #allocation1 [shape = 'u32[144,128]{1,0:T(1,128)}', space=vmem, size = 0x12000, scoped, tag = 'internal scratch']
  %s0 = inlined_call_operand.vmem [shape: f32[8,16], index: 0, kind: input, shape index: {}]
  %s1 = inlined_call_operand.vmem [shape: f32[16,32], index: 1, kind: input, shape index: {}]
  %s2 = inlined_call_operand.vmem [shape: f32[1,32], index: 2, kind: input, shape index: {}]
  %s3 = inlined_call_operand.vmem [shape: f32[1,32], index: 3, kind: input, shape index: {}]
  %s4 = inlined_call_operand.vmem [shape: f32[32,8], index: 4, kind: input, shape index: {}]
  %s5 = inlined_call_operand.hbm [shape: f32[8,8], index: 5, kind: output, shape index: {}]
  %s6 = sld [smem:[#allocation0]]
  $region30: #{global_projector_forward.1} parent=0
    _
  %s8 = ssub.s32 1, %s6
  %s9 = scalar_select 0, %s8, %s6
  $region1: #{global_projector_forward.1} parent=0
    #allocation2 [shape = 'u8[4096]{0}', space=vmem, size = 0x1000, scoped, tag = 'output window, operand 0, single buffered']
    #allocation3 [shape = 's32[1]{0}', space=sflag, size = 0x4, scoped, tag = 'scoped memory for global_projector_forward.1']
    %10 = vsyncpa [#allocation3], 0
    // Predicated region
    $region2: #{global_projector_forward.1} parent=1 // pred_check
      _
    $region3: #{global_projector_forward.1} parent=1 // pred_check_branch
      %12 = sbr.rel (0) target = $region5
    $region4: #{global_projector_forward.1} parent=1 // pred_region
      _
    $region5: #{global_projector_forward.1} parent=1 // pred_fallthru
      _
    // Predicated region
    $region6: #{global_projector_forward.1} parent=1 // pred_check
      _
    $region7: #{global_projector_forward.1} parent=1 // pred_check_branch
      %14 = sbr.rel (0) target = $region9
    $region8: #{global_projector_forward.1} parent=1 // pred_region
      _
    $region9: #{global_projector_forward.1} parent=1 // pred_fallthru
      _
    // Predicated region
    $region10: #{global_projector_forward.1} parent=1 // pred_check
      _
    $region11: #{global_projector_forward.1} parent=1 // pred_check_branch
      %16 = sbr.rel (0) target = $region13
    $region12: #{global_projector_forward.1} parent=1 // pred_region
      _
    $region13: #{global_projector_forward.1} parent=1 // pred_fallthru
      _
    // Predicated region
    $region14: #{global_projector_forward.1} parent=1 // pred_check
      _
    $region15: #{global_projector_forward.1} parent=1 // pred_check_branch
      %18 = sbr.rel (0) target = $region17
    $region16: #{global_projector_forward.1} parent=1 // pred_region
      _
    $region17: #{global_projector_forward.1} parent=1 // pred_fallthru
      _
    // Predicated region
    $region18: #{global_projector_forward.1} parent=1 // pred_check
      _
    $region19: #{global_projector_forward.1} parent=1 // pred_check_branch
      %20 = sbr.rel (0) target = $region21
    $region20: #{global_projector_forward.1} parent=1 // pred_region
      _
    $region21: #{global_projector_forward.1} parent=1 // pred_fallthru
      _
    %v21 = vld [vmem:[%s0] sm:$0xff]
    %v22 = vld [vmem:[%s1] sm:$0xff]
    %v23 = vld [vmem:[%s1 + $0x8] sm:$0xff]
    %vm24 = vcmask 130048
    %v26 = vsel %vm24, %v21, 0
    %28 = vmatprep.subr.mxu0 0.0
    %29 = vmatpush1.msra.mxu0 %v22
    %30 = vmatprep.subr.mxu0 0.0
    %31 = vmatpush1.msra.mxu0 %v23
    %32 = vmatprep.subr.mxu0 0.0
    %33 = vmatpush1.msra.mxu0 0.0
    %34 = vmatprep.subr.mxu0 0.0
    %35 = vmatpush1.msra.mxu0 0.0
    %36 = vmatprep.subr.mxu0 0.0
    %37 = vmatpush1.msra.mxu0 0.0
    %38 = vmatprep.subr.mxu0 0.0
    %39 = vmatpush1.msra.mxu0 0.0
    %40 = vmatprep.subr.mxu0 0.0
    %41 = vmatpush1.msra.mxu0 0.0
    %42 = vmatprep.subr.mxu0 0.0
    %43 = vmatpush1.msra.mxu0 0.0
    %44 = vmatprep.subr.mxu0 0.0
    %45 = vmatpush1.msra.mxu0 0.0
    %46 = vmatprep.subr.mxu0 0.0
    %47 = vmatpush1.msra.mxu0 0.0
    %48 = vmatprep.subr.mxu0 0.0
    %49 = vmatpush1.msra.mxu0 0.0
    %50 = vmatprep.subr.mxu0 0.0
    %51 = vmatpush1.msra.mxu0 0.0
    %52 = vmatprep.subr.mxu0 0.0
    %53 = vmatpush1.msra.mxu0 0.0
    %54 = vmatprep.subr.mxu0 0.0
    %55 = vmatpush1.msra.mxu0 0.0
    %56 = vmatprep.subr.mxu0 0.0
    %57 = vmatpush1.msra.mxu0 0.0
    %58 = vmatprep.subr.mxu0 0.0
    %59 = vmatpush1.msra.mxu0 0.0
    %60 = vmatprep.subr.mxu0 0.0
    %61 = vmatpush1.msra.mxu0 0.0
    %62 = vmatprep.subr.mxu0 0.0
    %63 = vmatpush1.msra.mxu0 0.0
    %64 = vmatprep.subr.mxu0 0.0
    %65 = vmatpush1.msra.mxu0 0.0
    %66 = vmatprep.subr.mxu0 0.0
    %67 = vmatpush1.msra.mxu0 0.0
    %68 = vmatprep.subr.mxu0 0.0
    %69 = vmatpush1.msra.mxu0 0.0
    %70 = vmatprep.subr.mxu0 0.0
    %71 = vmatpush1.msra.mxu0 0.0
    %72 = vmatprep.subr.mxu0 0.0
    %73 = vmatpush1.msra.mxu0 0.0
    %74 = vmatprep.subr.mxu0 0.0
    %75 = vmatpush1.msra.mxu0 0.0
    %76 = vmatprep.subr.mxu0 0.0
    %77 = vmatpush1.msra.mxu0 0.0
    %78 = vmatprep.subr.mxu0 0.0
    %79 = vmatpush1.msra.mxu0 0.0
    %80 = vmatprep.subr.mxu0 0.0
    %81 = vmatpush1.msra.mxu0 0.0
    %82 = vmatprep.subr.mxu0 0.0
    %83 = vmatpush1.msra.mxu0 0.0
    %84 = vmatprep.subr.mxu0 0.0
    %85 = vmatpush1.msra.mxu0 0.0
    %86 = vmatprep.subr.mxu0 0.0
    %87 = vmatpush1.msra.mxu0 0.0
    %88 = vmatprep.subr.mxu0 0.0
    %89 = vmatpush1.msra.mxu0 0.0
    %90 = vmatprep.subr.mxu0 0.0
    %91 = vmatpush1.msra.mxu0 0.0
    %92 = vmatprep.mubr.f32.mxu0 0.0
    %93 = vmatmul.mubr.f32.gmra.mrb[0].mxu0 %v26
    %v94 = vpop.f32.mrb[0].mxu0
    %v95 = vadd.f32 0.0, %v94
    %v96 = vpop.f32.mrb[0].mxu0
    %97 = vdwg.mxu0
    %v98 = vld [vmem:[%s2] sm:$0x1]
    %v100 = vlaneseq
    %v101 = vshrl.u32 %v100, 7
    %v102 = vsub.s32 0, %v101
    %v103 = vrot.slane %v98, %v102
    %v105 = vmul.f32 %v95, %v103
    %v106 = vld [vmem:[%s3] sm:$0x1]
    %v108 = vlaneseq
    %v109 = vshrl.u32 %v108, 7
    %v110 = vsub.s32 0, %v109
    %v111 = vrot.slane %v106, %v110
    %v113 = vadd.f32 %v105, %v111
    %v114 = vmax.f32 %v113, 0.0
    %v115 = vld [vmem:[%s4] sm:$0xff]
    %v116 = vld [vmem:[%s4 + $0x8] sm:$0xff]
    %v117 = vld [vmem:[%s4 + $0x10] sm:$0xff]
    %v118 = vld [vmem:[%s4 + $0x18] sm:$0xff]
    %vm119 = vcmask 261120
    %v121 = vsel %vm119, %v114, 0
    %123 = vmatprep.subr.mxu0 0.0
    %124 = vmatpush1.msra.mxu0 %v115
    %125 = vmatprep.subr.mxu0 0.0
    %126 = vmatpush1.msra.mxu0 %v116
    %127 = vmatprep.subr.mxu0 0.0
    %128 = vmatpush1.msra.mxu0 %v117
    %129 = vmatprep.subr.mxu0 0.0
    %130 = vmatpush1.msra.mxu0 %v118
    %131 = vmatprep.subr.mxu0 0.0
    %132 = vmatpush1.msra.mxu0 0.0
    %133 = vmatprep.subr.mxu0 0.0
    %134 = vmatpush1.msra.mxu0 0.0
    %135 = vmatprep.subr.mxu0 0.0
    %136 = vmatpush1.msra.mxu0 0.0
    %137 = vmatprep.subr.mxu0 0.0
    %138 = vmatpush1.msra.mxu0 0.0
    %139 = vmatprep.subr.mxu0 0.0
    %140 = vmatpush1.msra.mxu0 0.0
    %141 = vmatprep.subr.mxu0 0.0
    %142 = vmatpush1.msra.mxu0 0.0
    %143 = vmatprep.subr.mxu0 0.0
    %144 = vmatpush1.msra.mxu0 0.0
    %145 = vmatprep.subr.mxu0 0.0
    %146 = vmatpush1.msra.mxu0 0.0
    %147 = vmatprep.subr.mxu0 0.0
    %148 = vmatpush1.msra.mxu0 0.0
    %149 = vmatprep.subr.mxu0 0.0
    %150 = vmatpush1.msra.mxu0 0.0
    %151 = vmatprep.subr.mxu0 0.0
    %152 = vmatpush1.msra.mxu0 0.0
    %153 = vmatprep.subr.mxu0 0.0
    %154 = vmatpush1.msra.mxu0 0.0
    %155 = vmatprep.subr.mxu0 0.0
    %156 = vmatpush1.msra.mxu0 0.0
    %157 = vmatprep.subr.mxu0 0.0
    %158 = vmatpush1.msra.mxu0 0.0
    %159 = vmatprep.subr.mxu0 0.0
    %160 = vmatpush1.msra.mxu0 0.0
    %161 = vmatprep.subr.mxu0 0.0
    %162 = vmatpush1.msra.mxu0 0.0
    %163 = vmatprep.subr.mxu0 0.0
    %164 = vmatpush1.msra.mxu0 0.0
    %165 = vmatprep.subr.mxu0 0.0
    %166 = vmatpush1.msra.mxu0 0.0
    %167 = vmatprep.subr.mxu0 0.0
    %168 = vmatpush1.msra.mxu0 0.0
    %169 = vmatprep.subr.mxu0 0.0
    %170 = vmatpush1.msra.mxu0 0.0
    %171 = vmatprep.subr.mxu0 0.0
    %172 = vmatpush1.msra.mxu0 0.0
    %173 = vmatprep.subr.mxu0 0.0
    %174 = vmatpush1.msra.mxu0 0.0
    %175 = vmatprep.subr.mxu0 0.0
    %176 = vmatpush1.msra.mxu0 0.0
    %177 = vmatprep.subr.mxu0 0.0
    %178 = vmatpush1.msra.mxu0 0.0
    %179 = vmatprep.subr.mxu0 0.0
    %180 = vmatpush1.msra.mxu0 0.0
    %181 = vmatprep.subr.mxu0 0.0
    %182 = vmatpush1.msra.mxu0 0.0
    %183 = vmatprep.subr.mxu0 0.0
    %184 = vmatpush1.msra.mxu0 0.0
    %185 = vmatprep.subr.mxu0 0.0
    %186 = vmatpush1.msra.mxu0 0.0
    %187 = vmatprep.mubr.f32.mxu0 0.0
    %188 = vmatmul.mubr.f32.gmra.mrb[0].mxu0 %v121
    %v189 = vpop.f32.mrb[0].mxu0
    %v190 = vadd.f32 0.0, %v189
    %v191 = vpop.f32.mrb[0].mxu0
    %192 = vdwg.mxu0
    %v193 = vmul.f32 %v190, %v190
    %vm194 = vcmask 64512
    %v195 = vsel %vm194, %v193, 0.0
    %196 = vadd.xlane.f32.xlu0 %v195
    %v197 = vpop.xlane.xlu0 %196
    %v198 = vrsqrt.pop %v197
    %v199 = vmul.f32 %v197, %v198
    %vm200 = vcmp.eq.f32.partialorder %v197, inf
    %v201 = vsel %vm200, %v197, %v199
    %vm202 = vcmp.eq.f32.partialorder %v197, 0.0
    %v203 = vand.u32 %v197, 2147483648
    %v204 = vsel %vm202, %v203, %v201
    %v205 = vmax.f32 %v204, 1e-12
    %v206 = vrcp.pop %v205
    %v207 = vmul.f32 %v190, %v206
    %208 = vst.msk [vmem:[#allocation2] sm:$0xff] %vm194, %v207
    // Predicated region
    $region22: #{global_projector_forward.1} parent=1 // pred_check
      _
    $region23: #{global_projector_forward.1} parent=1 // pred_check_branch
      %210 = sbr.rel (0) target = $region25
    $region24: #{global_projector_forward.1} parent=1 // pred_region
      %s212 = ssub.s32 128, 128
      %213 = vsyncadd [#allocation3], %s212
      %s215 = sshll.u32 [#allocation2], 4
      %s216 = int_to_ptr.vmem [resolvable:$true] %s215
      %218 = dma.vmem_to_hbm [thread:$0]  %s216, 128, %s5, [#allocation3]
    $region25: #{global_projector_forward.1} parent=1 // pred_fallthru
      _
    // Predicated region
    $region26: #{global_projector_forward.1} parent=1 // pred_check
      _
    $region27: #{global_projector_forward.1} parent=1 // pred_check_branch
      %220 = sbr.rel (0) target = $region29
    $region28: #{global_projector_forward.1} parent=1 // pred_region
      %221 = dma.done [#allocation3], 128
    $region29: #{global_projector_forward.1} parent=1 // pred_fallthru
      _
    %222 = vsyncpa [#allocation3], 1

</llo_original>
